<compile_context>
chip_gen: v7x
topology: tpu7x:2x2x1
jax: 0.10.0
libtpu: 0.0.40
codegen_flags: <defaults>
</compile_context>

<pallas_src>
import functools

import jax
import jax.numpy as jnp
from jax import lax
from jax.experimental import pallas as pl
from jax.experimental.pallas import tpu as pltpu

_LANES = 128
_MAX_BLOCK_ROWS = 4096      # 4096x128 f32 = 2 MiB per plane -> 8 MiB/step all-f32
_GROUP_ROWS = 256           # in-kernel accumulation granularity (rows per group)
_ROW_ALIGN = 16             # covers bf16 (16,128) min tile; multiple of 8 for f32
_VMEM_LIMIT_BYTES = 40 * 1024 * 1024   # fits 2x8 MiB double-buffered blocks + headroom


def _round_down(x, m):
    return (x // m) * m


def _craft_partial_kernel(pred_ref, cmap_ref, amap_ref, part_ref, *,
                          pos_thres, neg_thres, disjoint):
    """Reduce one (2, r_block, 128) pred block + two (r_block, 128) map blocks
    to a (4, 8, 128) partial:
      [0] char numerator, [1] char positive count,
      [2] aff  numerator, [3] aff  positive count.
    Every block handed to this kernel is fully valid (no padding), so there is
    no masking anywhere on the fast path.
    """
    r_block = cmap_ref.shape[0]
    g_rows = min(_GROUP_ROWS, r_block)
    n_groups = r_block // g_rows
    rem_rows = r_block - n_groups * g_rows   # static; multiple of _ROW_ALIGN

    def accum(start, nrows, accs):
        c_num, c_cnt, a_num, a_cnt = accs
        sl = pl.ds(start, nrows)
        cpred = pred_ref[0, sl, :].astype(jnp.float32)
        apred = pred_ref[1, sl, :].astype(jnp.float32)
        ctgt = cmap_ref[sl, :].astype(jnp.float32)
        atgt = amap_ref[sl, :].astype(jnp.float32)

        def branch(pred, tgt, num_acc, cnt_acc):
            diff = pred - tgt
            sq = diff * diff
            pos_m = tgt >= pos_thres
            neg_m = tgt <= neg_thres
            if disjoint:
                # pos/neg regions are disjoint -> single select.
                num = jnp.where(jnp.logical_or(pos_m, neg_m), sq, 0.0)
            else:
                # Exact torch form (double-counts overlapping elements).
                num = sq * (jnp.where(pos_m, 1.0, 0.0) + jnp.where(neg_m, 1.0, 0.0))
            cnt = jnp.where(pos_m, 1.0, 0.0)
            # Sublane-preserving tree reduce to one (8, 128) vreg per quantity
            # (pure VPU adds; the cross-lane reduction happens once on the host).
            num8 = jnp.sum(num.reshape(nrows // 8, 8, _LANES), axis=0)
            cnt8 = jnp.sum(cnt.reshape(nrows // 8, 8, _LANES), axis=0)
            return num_acc + num8, cnt_acc + cnt8

        c_num, c_cnt = branch(cpred, ctgt, c_num, c_cnt)
        a_num, a_cnt = branch(apred, atgt, a_num, a_cnt)
        return c_num, c_cnt, a_num, a_cnt

    zero = jnp.zeros((8, _LANES), jnp.float32)
    accs = (zero, zero, zero, zero)
    if n_groups == 1:
        accs = accum(0, g_rows, accs)
    else:
        accs = lax.fori_loop(
            0, n_groups,
            lambda g, a: accum(pl.multiple_of(g * g_rows, g_rows), g_rows, a),
            accs)
    if rem_rows:
        accs = accum(n_groups * g_rows, rem_rows, accs)

    part_ref[0, 0] = accs[0]
    part_ref[0, 1] = accs[1]
    part_ref[0, 2] = accs[2]
    part_ref[0, 3] = accs[3]


def craft_loss_pallas(output, character_map, affinity_map,
                      pos_thres=0.1, neg_thres=0.0):
    B, H, W, C = output.shape
    assert C >= 2, "output needs >=2 channels (character, affinity)"
    N = B * H * W
    pos_thres = float(pos_thres)
    neg_thres = float(neg_thres)
    disjoint = pos_thres > neg_thres

    def keep_float(x):
        # Preserve narrow floating dtypes per plane (bf16 stays bf16).
        return x if jnp.issubdtype(x.dtype, jnp.floating) else x.astype(jnp.float32)

    out2 = keep_float(output).reshape(N, C)
    cmap_flat = keep_float(character_map).reshape(N)
    amap_flat = keep_float(affinity_map).reshape(N)

    rows_full = N // _LANES                       # full 128-lane rows
    k_sums = jnp.zeros((4,), jnp.float32)         # [c_num, c_cnt, a_num, a_cnt]
    tail_start = 0

    if rows_full >= _ROW_ALIGN:
        num_chunks = pl.cdiv(rows_full, _MAX_BLOCK_ROWS)
        if rows_full >= 2 * _ROW_ALIGN:
            num_chunks = max(num_chunks, 2)       # let a v7x megacore split the grid
        r_block = max(_ROW_ALIGN,
                      _round_down(rows_full // num_chunks, _ROW_ALIGN))
        num_chunks = rows_full // r_block         # floor: every block is full-size
        main_rows = num_chunks * r_block
        n_rows_elems = rows_full * _LANES

        # Predictions: one transposing copy de-interleaves channels 0/1.
        preds = jnp.transpose(out2[:, :2], (1, 0))                 # (2, N)
        preds_k = preds[:, :n_rows_elems].reshape(2, rows_full, _LANES)

        def plane2d(x_flat):
            if n_rows_elems == N:
                return x_flat.reshape(rows_full, _LANES)           # copy-free reshape
            return lax.slice(x_flat, (0,), (n_rows_elems,)).reshape(rows_full, _LANES)

        cmap_k = plane2d(cmap_flat)
        amap_k = plane2d(amap_flat)

        kernel = functools.partial(_craft_partial_kernel,
                                   pos_thres=pos_thres, neg_thres=neg_thres,
                                   disjoint=disjoint)

        parts = pl.pallas_call(
            kernel,
            out_shape=jax.ShapeDtypeStruct((num_chunks, 4, 8, _LANES), jnp.float32),
            grid=(num_chunks,),
            in_specs=[
                pl.BlockSpec((2, r_block, _LANES), lambda i: (0, i, 0)),
                pl.BlockSpec((r_block, _LANES), lambda i: (i, 0)),
                pl.BlockSpec((r_block, _LANES), lambda i: (i, 0)),
            ],
            out_specs=pl.BlockSpec((1, 4, 8, _LANES), lambda i: (i, 0, 0, 0)),
            compiler_params=pltpu.CompilerParams(
                dimension_semantics=("parallel",),
                vmem_limit_bytes=_VMEM_LIMIT_BYTES),
        )(preds_k, cmap_k, amap_k)

        k_sums = jnp.sum(parts, axis=(0, 2, 3))   # (4,)
        tail_start = main_rows * _LANES

    # Remainder (tail rows + sub-128 leftovers) in plain JAX: tiny, exact torch math.
    if tail_start < N:
        def tail_branch(pred, tgt):
            pred = pred.astype(jnp.float32)
            tgt = tgt.astype(jnp.float32)
            sq = (pred - tgt) ** 2
            pos = (tgt >= pos_thres).astype(jnp.float32)
            neg = (tgt <= neg_thres).astype(jnp.float32)
            return jnp.sum(sq * pos) + jnp.sum(sq * neg), jnp.sum(pos)

        tc_num, tc_cnt = tail_branch(out2[tail_start:, 0], cmap_flat[tail_start:])
        ta_num, ta_cnt = tail_branch(out2[tail_start:, 1], amap_flat[tail_start:])
        k_sums = k_sums + jnp.stack([tc_num, tc_cnt, ta_num, ta_cnt])

    n = jnp.float32(N)
    loss_char = k_sums[0] / (k_sums[1] + n)
    loss_aff = k_sums[2] / (k_sums[3] + n)
    return (loss_char * 2.0 + loss_aff) * 100.0


def _reference_loss(output, character_map, affinity_map,
                    pos_thres=0.1, neg_thres=0.0):
    """Pure-JAX reference mirroring the PyTorch forward exactly."""
    B, H, W, C = output.shape
    N = B * H * W
    o = output.reshape(N, C).astype(jnp.float32)

    def hnm(pred, tgt):
        all_loss = (pred - tgt) ** 2
        pos = tgt >= pos_thres
        neg = tgt <= neg_thres
        return ((jnp.sum(all_loss * pos) + jnp.sum(all_loss * neg))
                / (jnp.sum(pos) + N))

    lc = hnm(o[:, 0], character_map.reshape(N).astype(jnp.float32))
    la = hnm(o[:, 1], affinity_map.reshape(N).astype(jnp.float32))
    return (lc * 2.0 + la) * 100.0


if __name__ == "__main__":
    import numpy as np

    def run_case(shape, key):
        B, H, W, C = shape
        k1, k2, k3 = jax.random.split(key, 3)
        output = jax.random.uniform(k1, (B, H, W, C), dtype=jnp.float32)
        # Maps span negative and positive values so both masks are non-trivial.
        character_map = jax.random.uniform(k2, (B, H, W), dtype=jnp.float32,
                                           minval=-0.5, maxval=1.0)
        affinity_map = jax.random.uniform(k3, (B, H, W), dtype=jnp.float32,
                                          minval=-0.5, maxval=1.0)
        got = jax.jit(craft_loss_pallas)(output, character_map, affinity_map)
        jax.block_until_ready(got)
        ref = _reference_loss(output, character_map, affinity_map)
        assert np.allclose(np.asarray(got), np.asarray(ref),
                           rtol=1e-4, atol=1e-5), (shape, got, ref)

    key = jax.random.PRNGKey(0)
    k1, k2 = jax.random.split(key)
    run_case((2, 32, 32, 2), k1)   # N multiple of 128: pure-kernel path, no tail
    run_case((2, 33, 40, 2), k2)   # N not block-aligned: kernel + JAX tail path

    print("KERNEL_OK")
</pallas_src>

<mosaic_0001>
module attributes {stable_mosaic.version = 11 : i64} {
  func.func @_craft_partial_kernel(%arg0: i32, %arg1: memref<2x16x128xf32, #tpu.memory_space<vmem>>, %arg2: memref<16x128xf32, #tpu.memory_space<vmem>>, %arg3: memref<16x128xf32, #tpu.memory_space<vmem>>, %arg4: memref<1x4x8x128xf32, #tpu.memory_space<vmem>>) attributes {dimension_semantics = [#tpu.dimension_semantics<parallel>], iteration_bounds = array<i64: 1>, scalar_prefetch = 0 : i64, scratch_operands = 0 : i64, tpu.core_type = #tpu.core_type<tc>, window_params = [{transform_indices = @transform_0, window_bounds = array<i64: 2, 16, 128>}, {transform_indices = @transform_1, window_bounds = array<i64: 16, 128>}, {transform_indices = @transform_2, window_bounds = array<i64: 16, 128>}, {transform_indices = @transform_3, window_bounds = array<i64: 1, 4, 8, 128>}]} {
    %cst = arith.constant 0.000000e+00 : f32
    %0 = vector.broadcast %cst : f32 to vector<8x128xf32>
    %c0 = arith.constant 0 : index
    %c0_0 = arith.constant 0 : index
    %c0_1 = arith.constant 0 : index
    %1 = vector.load %arg1[%c0, %c0_0, %c0_1] : memref<2x16x128xf32, #tpu.memory_space<vmem>>, vector<1x16x128xf32>
    %2 = vector.shape_cast %1 : vector<1x16x128xf32> to vector<16x128xf32>
    %c1 = arith.constant 1 : index
    %c0_2 = arith.constant 0 : index
    %c0_3 = arith.constant 0 : index
    %3 = vector.load %arg1[%c1, %c0_2, %c0_3] : memref<2x16x128xf32, #tpu.memory_space<vmem>>, vector<1x16x128xf32>
    %4 = vector.shape_cast %3 : vector<1x16x128xf32> to vector<16x128xf32>
    %c0_4 = arith.constant 0 : index
    %c0_5 = arith.constant 0 : index
    %5 = vector.load %arg2[%c0_4, %c0_5] : memref<16x128xf32, #tpu.memory_space<vmem>>, vector<16x128xf32>
    %c0_6 = arith.constant 0 : index
    %c0_7 = arith.constant 0 : index
    %6 = vector.load %arg3[%c0_6, %c0_7] : memref<16x128xf32, #tpu.memory_space<vmem>>, vector<16x128xf32>
    %7 = arith.subf %2, %5 : vector<16x128xf32>
    %8 = arith.mulf %7, %7 : vector<16x128xf32>
    %cst_8 = arith.constant 1.000000e-01 : f32
    %9 = vector.broadcast %cst_8 : f32 to vector<16x128xf32>
    %10 = arith.cmpf oge, %5, %9 : vector<16x128xf32>
    %cst_9 = arith.constant 0.000000e+00 : f32
    %11 = vector.broadcast %cst_9 : f32 to vector<16x128xf32>
    %12 = arith.cmpf ole, %5, %11 : vector<16x128xf32>
    %13 = arith.ori %10, %12 : vector<16x128xi1>
    %cst_10 = arith.constant 0.000000e+00 : f32
    %14 = vector.broadcast %cst_10 : f32 to vector<16x128xf32>
    %15 = arith.select %13, %8, %14 : vector<16x128xi1>, vector<16x128xf32>
    %cst_11 = arith.constant 1.000000e+00 : f32
    %cst_12 = arith.constant 0.000000e+00 : f32
    %16 = vector.broadcast %cst_11 : f32 to vector<16x128xf32>
    %17 = vector.broadcast %cst_12 : f32 to vector<16x128xf32>
    %18 = arith.select %10, %16, %17 : vector<16x128xi1>, vector<16x128xf32>
    %19 = vector.shape_cast %15 : vector<16x128xf32> to vector<2x8x128xf32>
    %cst_13 = arith.constant dense<0.000000e+00> : vector<8x128xf32>
    %20 = vector.multi_reduction <add>, %19, %cst_13 [0] : vector<2x8x128xf32> to vector<8x128xf32>
    %21 = vector.shape_cast %18 : vector<16x128xf32> to vector<2x8x128xf32>
    %cst_14 = arith.constant dense<0.000000e+00> : vector<8x128xf32>
    %22 = vector.multi_reduction <add>, %21, %cst_14 [0] : vector<2x8x128xf32> to vector<8x128xf32>
    %23 = arith.addf %0, %20 : vector<8x128xf32>
    %24 = arith.addf %0, %22 : vector<8x128xf32>
    %25 = arith.subf %4, %6 : vector<16x128xf32>
    %26 = arith.mulf %25, %25 : vector<16x128xf32>
    %cst_15 = arith.constant 1.000000e-01 : f32
    %27 = vector.broadcast %cst_15 : f32 to vector<16x128xf32>
    %28 = arith.cmpf oge, %6, %27 : vector<16x128xf32>
    %cst_16 = arith.constant 0.000000e+00 : f32
    %29 = vector.broadcast %cst_16 : f32 to vector<16x128xf32>
    %30 = arith.cmpf ole, %6, %29 : vector<16x128xf32>
    %31 = arith.ori %28, %30 : vector<16x128xi1>
    %cst_17 = arith.constant 0.000000e+00 : f32
    %32 = vector.broadcast %cst_17 : f32 to vector<16x128xf32>
    %33 = arith.select %31, %26, %32 : vector<16x128xi1>, vector<16x128xf32>
    %cst_18 = arith.constant 1.000000e+00 : f32
    %cst_19 = arith.constant 0.000000e+00 : f32
    %34 = vector.broadcast %cst_18 : f32 to vector<16x128xf32>
    %35 = vector.broadcast %cst_19 : f32 to vector<16x128xf32>
    %36 = arith.select %28, %34, %35 : vector<16x128xi1>, vector<16x128xf32>
    %37 = vector.shape_cast %33 : vector<16x128xf32> to vector<2x8x128xf32>
    %cst_20 = arith.constant dense<0.000000e+00> : vector<8x128xf32>
    %38 = vector.multi_reduction <add>, %37, %cst_20 [0] : vector<2x8x128xf32> to vector<8x128xf32>
    %39 = vector.shape_cast %36 : vector<16x128xf32> to vector<2x8x128xf32>
    %cst_21 = arith.constant dense<0.000000e+00> : vector<8x128xf32>
    %40 = vector.multi_reduction <add>, %39, %cst_21 [0] : vector<2x8x128xf32> to vector<8x128xf32>
    %41 = arith.addf %0, %38 : vector<8x128xf32>
    %42 = arith.addf %0, %40 : vector<8x128xf32>
    %c0_22 = arith.constant 0 : index
    %c0_23 = arith.constant 0 : index
    %c0_24 = arith.constant 0 : index
    %c0_25 = arith.constant 0 : index
    %43 = vector.load %arg4[%c0_22, %c0_23, %c0_24, %c0_25] : memref<1x4x8x128xf32, #tpu.memory_space<vmem>>, vector<1x1x8x128xf32>
    %44 = vector.shape_cast %43 : vector<1x1x8x128xf32> to vector<8x128xf32>
    %45 = vector.shape_cast %23 : vector<8x128xf32> to vector<1x1x8x128xf32>
    tpu.vector_store %arg4[%c0_22, %c0_23, %c0_24, %c0_25], %45 {strides = array<i32>} : memref<1x4x8x128xf32, #tpu.memory_space<vmem>>, vector<1x1x8x128xf32>,
    %c0_26 = arith.constant 0 : index
    %c1_27 = arith.constant 1 : index
    %c0_28 = arith.constant 0 : index
    %c0_29 = arith.constant 0 : index
    %46 = vector.load %arg4[%c0_26, %c1_27, %c0_28, %c0_29] : memref<1x4x8x128xf32, #tpu.memory_space<vmem>>, vector<1x1x8x128xf32>
    %47 = vector.shape_cast %46 : vector<1x1x8x128xf32> to vector<8x128xf32>
    %48 = vector.shape_cast %24 : vector<8x128xf32> to vector<1x1x8x128xf32>
    tpu.vector_store %arg4[%c0_26, %c1_27, %c0_28, %c0_29], %48 {strides = array<i32>} : memref<1x4x8x128xf32, #tpu.memory_space<vmem>>, vector<1x1x8x128xf32>,
    %c0_30 = arith.constant 0 : index
    %c2 = arith.constant 2 : index
    %c0_31 = arith.constant 0 : index
    %c0_32 = arith.constant 0 : index
    %49 = vector.load %arg4[%c0_30, %c2, %c0_31, %c0_32] : memref<1x4x8x128xf32, #tpu.memory_space<vmem>>, vector<1x1x8x128xf32>
    %50 = vector.shape_cast %49 : vector<1x1x8x128xf32> to vector<8x128xf32>
    %51 = vector.shape_cast %41 : vector<8x128xf32> to vector<1x1x8x128xf32>
    tpu.vector_store %arg4[%c0_30, %c2, %c0_31, %c0_32], %51 {strides = array<i32>} : memref<1x4x8x128xf32, #tpu.memory_space<vmem>>, vector<1x1x8x128xf32>,
    %c0_33 = arith.constant 0 : index
    %c3 = arith.constant 3 : index
    %c0_34 = arith.constant 0 : index
    %c0_35 = arith.constant 0 : index
    %52 = vector.load %arg4[%c0_33, %c3, %c0_34, %c0_35] : memref<1x4x8x128xf32, #tpu.memory_space<vmem>>, vector<1x1x8x128xf32>
    %53 = vector.shape_cast %52 : vector<1x1x8x128xf32> to vector<8x128xf32>
    %54 = vector.shape_cast %42 : vector<8x128xf32> to vector<1x1x8x128xf32>
    tpu.vector_store %arg4[%c0_33, %c3, %c0_34, %c0_35], %54 {strides = array<i32>} : memref<1x4x8x128xf32, #tpu.memory_space<vmem>>, vector<1x1x8x128xf32>,
    return
  }
  func.func @transform_0(%arg0: i32) -> (i32, i32, i32) {
    %c0_i32 = arith.constant 0 : i32
    %c0_i32_0 = arith.constant 0 : i32
    %c0_i32_1 = arith.constant 0 : i32
    return %c0_i32, %arg0, %c0_i32_0 : i32, i32, i32
  }
  func.func @transform_1(%arg0: i32) -> (i32, i32) {
    %c0_i32 = arith.constant 0 : i32
    %c0_i32_0 = arith.constant 0 : i32
    return %arg0, %c0_i32 : i32, i32
  }
  func.func @transform_2(%arg0: i32) -> (i32, i32) {
    %c0_i32 = arith.constant 0 : i32
    %c0_i32_0 = arith.constant 0 : i32
    return %arg0, %c0_i32 : i32, i32
  }
  func.func @transform_3(%arg0: i32) -> (i32, i32, i32, i32) {
    %c0_i32 = arith.constant 0 : i32
    %c0_i32_0 = arith.constant 0 : i32
    %c0_i32_1 = arith.constant 0 : i32
    %c0_i32_2 = arith.constant 0 : i32
    return %arg0, %c0_i32, %c0_i32_0, %c0_i32_1 : i32, i32, i32, i32
  }
}

</mosaic_0001>

<llo_original>
// kernel: craft_loss_pallas.1
$region0: #{craft_loss_pallas.1}
  #allocation0 [shape = 'u32[]', space=smem, size = 0x4, offset = 0x4, fixed_abs, tag = 'smem constant byte address 0x4 - core index']
  #allocation1 [shape = 'u32[144,128]{1,0:T(1,128)}', space=vmem, size = 0x12000, scoped, tag = 'internal scratch']
  %s0 = inlined_call_operand.vmem [shape: f32[2,16,128], index: 0, kind: input, shape index: {}]
  %s1 = inlined_call_operand.vmem [shape: f32[16,128], index: 1, kind: input, shape index: {}]
  %s2 = inlined_call_operand.vmem [shape: f32[16,128], index: 2, kind: input, shape index: {}]
  %s3 = inlined_call_operand.vmem [shape: f32[1,4,8,128], index: 3, kind: output, shape index: {}]
  %s4 = sld [smem:[#allocation0]]
  $region22: #{craft_loss_pallas.1} parent=0
    _
  %s6 = ssub.s32 1, %s4
  %s7 = scalar_select 0, %s6, %s4
  // Predicated region
  $region2: #{craft_loss_pallas.1} parent=0 // pred_check
    _
  $region3: #{craft_loss_pallas.1} parent=0 // pred_check_branch
    %9 = sbr.rel (0) target = $region5
  $region4: #{craft_loss_pallas.1} parent=0 // pred_region
    _
  $region5: #{craft_loss_pallas.1} parent=0 // pred_fallthru
    _
  // Predicated region
  $region6: #{craft_loss_pallas.1} parent=0 // pred_check
    _
  $region7: #{craft_loss_pallas.1} parent=0 // pred_check_branch
    %11 = sbr.rel (0) target = $region9
  $region8: #{craft_loss_pallas.1} parent=0 // pred_region
    _
  $region9: #{craft_loss_pallas.1} parent=0 // pred_fallthru
    _
  // Predicated region
  $region10: #{craft_loss_pallas.1} parent=0 // pred_check
    _
  $region11: #{craft_loss_pallas.1} parent=0 // pred_check_branch
    %13 = sbr.rel (0) target = $region13
  $region12: #{craft_loss_pallas.1} parent=0 // pred_region
    _
  $region13: #{craft_loss_pallas.1} parent=0 // pred_fallthru
    _
  %v14 = vld [vmem:[%s0] sm:$0xff]
  %v15 = vld [vmem:[%s0 + $0x8] sm:$0xff]
  %s16 = scalar_lea.vmem %s0, 16
  %v17 = vld [vmem:[%s16] sm:$0xff]
  %v18 = vld [vmem:[%s16 + $0x8] sm:$0xff]
  %v19 = vld [vmem:[%s1] sm:$0xff]
  %v20 = vld [vmem:[%s1 + $0x8] sm:$0xff]
  %v21 = vld [vmem:[%s2] sm:$0xff]
  %v22 = vld [vmem:[%s2 + $0x8] sm:$0xff]
  %v23 = vsub.f32 %v14, %v19
  %v24 = vsub.f32 %v15, %v20
  %v25 = vmul.f32 %v23, %v23
  %v26 = vmul.f32 %v24, %v24
  %vm27 = vcmp.ge.f32.partialorder %v19, 0.1
  %vm28 = vcmp.ge.f32.partialorder %v20, 0.1
  %vm29 = vcmp.le.f32.partialorder %v19, 0.0
  %vm30 = vcmp.le.f32.partialorder %v20, 0.0
  %vm31 = vmor %vm27, %vm29
  %vm32 = vmor %vm28, %vm30
  %v33 = vsel %vm31, %v25, 0.0
  %v34 = vsel %vm32, %v26, 0.0
  %v35 = vsel %vm27, 1.0, 0.0
  %v36 = vsel %vm28, 1.0, 0.0
  %v37 = vadd.f32 %v33, %v34
  %v38 = vadd.f32 %v35, %v36
  %v39 = vadd.f32 %v37, 0.0
  %v40 = vadd.f32 %v38, 0.0
  %v41 = vsub.f32 %v17, %v21
  %v42 = vsub.f32 %v18, %v22
  %v43 = vmul.f32 %v41, %v41
  %v44 = vmul.f32 %v42, %v42
  %vm45 = vcmp.ge.f32.partialorder %v21, 0.1
  %vm46 = vcmp.ge.f32.partialorder %v22, 0.1
  %vm47 = vcmp.le.f32.partialorder %v21, 0.0
  %vm48 = vcmp.le.f32.partialorder %v22, 0.0
  %vm49 = vmor %vm45, %vm47
  %vm50 = vmor %vm46, %vm48
  %v51 = vsel %vm49, %v43, 0.0
  %v52 = vsel %vm50, %v44, 0.0
  %v53 = vsel %vm45, 1.0, 0.0
  %v54 = vsel %vm46, 1.0, 0.0
  %v55 = vadd.f32 %v51, %v52
  %v56 = vadd.f32 %v53, %v54
  %v57 = vadd.f32 %v55, 0.0
  %v58 = vadd.f32 %v56, 0.0
  %59 = vst [vmem:[%s3] sm:$0xff] %v39
  %s60 = scalar_lea.vmem %s3, 8
  %61 = vst [vmem:[%s60] sm:$0xff] %v40
  %s62 = scalar_lea.vmem %s3, 16
  %63 = vst [vmem:[%s62] sm:$0xff] %v57
  %s64 = scalar_lea.vmem %s3, 24
  %65 = vst [vmem:[%s64] sm:$0xff] %v58
  // Predicated region
  $region14: #{craft_loss_pallas.1} parent=0 // pred_check
    _
  $region15: #{craft_loss_pallas.1} parent=0 // pred_check_branch
    %67 = sbr.rel (0) target = $region17
  $region16: #{craft_loss_pallas.1} parent=0 // pred_region
    _
  $region17: #{craft_loss_pallas.1} parent=0 // pred_fallthru
    _
  // Predicated region
  $region18: #{craft_loss_pallas.1} parent=0 // pred_check
    _
  $region19: #{craft_loss_pallas.1} parent=0 // pred_check_branch
    %69 = sbr.rel (0) target = $region21
  $region20: #{craft_loss_pallas.1} parent=0 // pred_region
    _
  $region21: #{craft_loss_pallas.1} parent=0 // pred_fallthru
    _

</llo_original>
